<compile_context>
chip_gen: v6e
topology: v6e:2x2x1
jax: 0.10.0
libtpu: 0.0.40
codegen_flags: <defaults>
</compile_context>

<pallas_src>
import functools

import jax
import jax.numpy as jnp
from jax.experimental import pallas as pl
from jax.experimental.pallas import tpu as pltpu


def _gcn_kernel(a_ref, x_ref, w_ref, b_ref, o_ref, *, apply_relu: bool):
    A = a_ref[...]          # (G, N, N)       f32
    X = x_ref[...]          # (G, N, F_in)    f32
    W = w_ref[...]          # (F_in, F_pad)   lane-dense (zero padded cols)
    b = b_ref[...]          # (1, F_pad)

    G, Np, Fi = X.shape

    # Feature transform first: one big MXU matmul over all G graphs in the
    # block. Np is a multiple of 8, so this reshape is a layout no-op.
    X2 = X.reshape(G * Np, Fi)
    Y = jnp.dot(X2, W, preferred_element_type=jnp.float32)
    Y = Y.reshape(G, Np, -1)                                   # (G, N, F_pad)

    # deg = rowsum(I + A) = rowsum(A) + 1 ;  dis = deg^(-1/2)
    deg = jnp.sum(A, axis=-1, keepdims=True) + 1.0             # (G, N, 1)
    dis = jax.lax.rsqrt(deg)

    # D (I + A) D @ Y == dis * (Z + A @ Z)  with  Z = dis * Y
    Z = dis * Y                                                # (G, N, F_pad)
    AZ = jnp.einsum('gij,gjf->gif', A, Z,
                    preferred_element_type=jnp.float32)        # (G, N, F_pad)
    out = dis * (Z + AZ) + b

    if apply_relu:
        out = jnp.maximum(out, 0.0)

    o_ref[...] = out.astype(o_ref.dtype)


def custom_graph_conv(adj, x, weight, bias, *, apply_relu: bool = False):
    """Pallas forward of CustomGraphConv.

    adj:    (N, N) or (B, N, N)  dense adjacency (float, no self loops needed)
    x:      (N, F_in) or (B, N, F_in) node features
    weight: (F_in, F_out)
    bias:   (F_out,)
    """
    squeeze = adj.ndim == 2
    if squeeze:
        adj = adj[None]
        x = x[None]

    B, N, _ = adj.shape
    f_in, f_out = weight.shape

    # Lane-dense output: pad F_out up to a multiple of 128 (zero columns).
    f_pad = ((f_out + 127) // 128) * 128
    # Sublane-aligned node count.
    n_pad = ((N + 7) // 8) * 8

    w_p = jnp.zeros((f_in, f_pad), jnp.float32).at[:, :f_out].set(
        weight.astype(jnp.float32))
    b_p = jnp.zeros((1, f_pad), jnp.float32).at[:, :f_out].set(
        bias.astype(jnp.float32))

    adj = adj.astype(jnp.float32)
    x = x.astype(jnp.float32)

    # Graphs per grid step: amortize per-step pipeline overhead while staying
    # inside VMEM (inputs/outputs are double-buffered; temporaries Y/Z/AZ/out
    # also live in VMEM).
    per_graph = 4 * (n_pad * n_pad + n_pad * f_in + 2 * n_pad * f_pad)
    budget = 24 * 2**20
    G = int(max(1, min(B, budget // max(4 * per_graph, 1))))
    G = min(G, 256)

    B_pad = pl.cdiv(B, G) * G
    if n_pad != N or B_pad != B:
        adj = jnp.pad(adj, ((0, B_pad - B), (0, n_pad - N), (0, n_pad - N)))
        x = jnp.pad(x, ((0, B_pad - B), (0, n_pad - N), (0, 0)))

    resident = 4 * (f_in * f_pad + f_pad)
    vmem_limit = int(min(48 * 2**20,
                         max(8 * 2**20, 4 * G * per_graph + 2 * resident)))

    out = pl.pallas_call(
        functools.partial(_gcn_kernel, apply_relu=apply_relu),
        out_shape=jax.ShapeDtypeStruct((B_pad, n_pad, f_pad), jnp.float32),
        grid_spec=pltpu.PrefetchScalarGridSpec(
            num_scalar_prefetch=0,
            grid=(B_pad // G,),
            in_specs=[
                pl.BlockSpec((G, n_pad, n_pad), lambda b: (b, 0, 0)),   # A
                pl.BlockSpec((G, n_pad, f_in), lambda b: (b, 0, 0)),    # X
                pl.BlockSpec((f_in, f_pad), lambda b: (0, 0)),          # W (resident)
                pl.BlockSpec((1, f_pad), lambda b: (0, 0)),             # bias (resident)
            ],
            out_specs=pl.BlockSpec((G, n_pad, f_pad), lambda b: (b, 0, 0)),
        ),
        compiler_params=pltpu.CompilerParams(
            dimension_semantics=("parallel",),
            vmem_limit_bytes=vmem_limit,
        ),
    )(adj, x, w_p, b_p)

    out = out[:B, :N, :f_out]
    if squeeze:
        out = out[0]
    return out


def _reference_single(adj, x, weight, bias, apply_relu=False):
    N = adj.shape[0]
    A_ = jnp.eye(N, dtype=jnp.float32) + adj
    dis = jnp.sum(A_, axis=1) ** (-0.5)
    D = jnp.diag(dis)
    out = D @ A_ @ D @ x @ weight + bias
    if apply_relu:
        out = jnp.maximum(out, 0.0)
    return out


def _make_problem(key, B, N, F_IN, F_OUT):
    k_adj, k_x, k_w, k_b = jax.random.split(key, 4)
    upper = (jax.random.uniform(k_adj, (B, N, N)) < 0.3).astype(jnp.float32)
    adj = jnp.triu(upper, k=1)
    adj = adj + jnp.swapaxes(adj, -1, -2)                 # symmetric, no self loops
    x = jax.random.normal(k_x, (B, N, F_IN), dtype=jnp.float32)
    # Matches torch.rand(...) / 100 - 0.005 init, deterministically in JAX.
    weight = jax.random.uniform(k_w, (F_IN, F_OUT), dtype=jnp.float32) / 100.0 - 0.005
    bias = jax.random.uniform(k_b, (F_OUT,), dtype=jnp.float32) / 100.0 - 0.005
    return adj, x, weight, bias


if __name__ == "__main__":
    key = jax.random.PRNGKey(0)
    k1, k2 = jax.random.split(key)

    # Problem 1: B=4 graphs, N=16 nodes, in=32, out=8 (aligned shapes).
    B, N, F_IN, F_OUT = 4, 16, 32, 8
    adj, x, weight, bias = _make_problem(k1, B, N, F_IN, F_OUT)

    out = custom_graph_conv(adj, x, weight, bias, apply_relu=True)
    out = jax.block_until_ready(out)
    ref = jax.vmap(lambda a, xx: _reference_single(a, xx, weight, bias, True))(adj, x)
    assert out.shape == (B, N, F_OUT)
    assert jnp.allclose(out, ref, atol=1e-5, rtol=1e-5)

    # Single-graph path (module's original call signature).
    out1 = custom_graph_conv(adj[0], x[0], weight, bias, apply_relu=True)
    out1 = jax.block_until_ready(out1)
    assert out1.shape == (N, F_OUT)
    assert jnp.allclose(out1, ref[0], atol=1e-5, rtol=1e-5)

    # Problem 2: unaligned shapes (B=3, N=12, in=20, out=8) to exercise the
    # batch/node padding path.
    B2, N2, F_IN2, F_OUT2 = 3, 12, 20, 8
    adj2, x2, weight2, bias2 = _make_problem(k2, B2, N2, F_IN2, F_OUT2)
    out2 = custom_graph_conv(adj2, x2, weight2, bias2, apply_relu=False)
    out2 = jax.block_until_ready(out2)
    ref2 = jax.vmap(lambda a, xx: _reference_single(a, xx, weight2, bias2, False))(adj2, x2)
    assert out2.shape == (B2, N2, F_OUT2)
    assert jnp.allclose(out2, ref2, atol=1e-5, rtol=1e-5)

    print("KERNEL_OK")
</pallas_src>

<mosaic_0001>
module attributes {stable_mosaic.version = 11 : i64} {
  func.func @_gcn_kernel(%arg0: i32, %arg1: memref<4x16x16xf32, #tpu.memory_space<vmem>>, %arg2: memref<4x16x32xf32, #tpu.memory_space<vmem>>, %arg3: memref<32x128xf32, #tpu.memory_space<vmem>>, %arg4: memref<1x128xf32, #tpu.memory_space<vmem>>, %arg5: memref<4x16x128xf32, #tpu.memory_space<vmem>>) attributes {dimension_semantics = [#tpu.dimension_semantics<parallel>], iteration_bounds = array<i64: 1>, scalar_prefetch = 0 : i64, scratch_operands = 0 : i64, tpu.core_type = #tpu.core_type<tc>, window_params = [{transform_indices = @transform_0, window_bounds = array<i64: 4, 16, 16>}, {transform_indices = @transform_1, window_bounds = array<i64: 4, 16, 32>}, {pipeline_mode = #tpu.pipeline_mode<synchronous>, transform_indices = @transform_2, window_bounds = array<i64: 32, 128>}, {pipeline_mode = #tpu.pipeline_mode<synchronous>, transform_indices = @transform_3, window_bounds = array<i64: 1, 128>}, {transform_indices = @transform_4, window_bounds = array<i64: 4, 16, 128>}]} {
    %c0 = arith.constant 0 : index
    %c0_0 = arith.constant 0 : index
    %c0_1 = arith.constant 0 : index
    %0 = vector.load %arg1[%c0, %c0_0, %c0_1] : memref<4x16x16xf32, #tpu.memory_space<vmem>>, vector<4x16x16xf32>
    %c0_2 = arith.constant 0 : index
    %c0_3 = arith.constant 0 : index
    %c0_4 = arith.constant 0 : index
    %1 = vector.load %arg2[%c0_2, %c0_3, %c0_4] : memref<4x16x32xf32, #tpu.memory_space<vmem>>, vector<4x16x32xf32>
    %c0_5 = arith.constant 0 : index
    %c0_6 = arith.constant 0 : index
    %2 = vector.load %arg3[%c0_5, %c0_6] : memref<32x128xf32, #tpu.memory_space<vmem>>, vector<32x128xf32>
    %c0_7 = arith.constant 0 : index
    %c0_8 = arith.constant 0 : index
    %3 = vector.load %arg4[%c0_7, %c0_8] : memref<1x128xf32, #tpu.memory_space<vmem>>, vector<1x128xf32>
    %4 = vector.shape_cast %1 : vector<4x16x32xf32> to vector<64x32xf32>
    %cst = arith.constant dense<0.000000e+00> : vector<64x128xf32>
    %5 = tpu.matmul %4, %2, %cst {dimension_numbers = #tpu.dot_dimension_numbers<[1], [0], [0], [1], [0, 0, 1, 1], [], []>} : vector<64x32xf32>, vector<32x128xf32>, vector<64x128xf32> -> vector<64x128xf32>
    %6 = vector.shape_cast %5 : vector<64x128xf32> to vector<4x16x128xf32>
    %cst_9 = arith.constant dense<0.000000e+00> : vector<4x16xf32>
    %7 = vector.multi_reduction <add>, %0, %cst_9 [2] : vector<4x16x16xf32> to vector<4x16xf32>
    %8 = vector.shape_cast %7 : vector<4x16xf32> to vector<4x16x1xf32>
    %cst_10 = arith.constant 1.000000e+00 : f32
    %9 = vector.broadcast %cst_10 : f32 to vector<4x16x1xf32>
    %10 = arith.addf %8, %9 : vector<4x16x1xf32>
    %11 = math.rsqrt %10 : vector<4x16x1xf32>
    %12 = vector.broadcast %11 : vector<4x16x1xf32> to vector<4x16x128xf32>
    %13 = arith.mulf %12, %6 : vector<4x16x128xf32>
    "tpu.trace_start"() <{level = 10 : i32, message = "gij,gjf->gif"}> : () -> ()
    %cst_11 = arith.constant dense<0.000000e+00> : vector<4x16x128xf32>
    %14 = tpu.matmul %0, %13, %cst_11 {dimension_numbers = #tpu.dot_dimension_numbers<[2], [1], [1], [2], [0, 0, 0, 1, 1, 2], [0], [0]>} : vector<4x16x16xf32>, vector<4x16x128xf32>, vector<4x16x128xf32> -> vector<4x16x128xf32>
    "tpu.trace_stop"() : () -> ()
    %15 = arith.addf %13, %14 : vector<4x16x128xf32>
    %16 = vector.broadcast %11 : vector<4x16x1xf32> to vector<4x16x128xf32>
    %17 = arith.mulf %16, %15 : vector<4x16x128xf32>
    %18 = vector.shape_cast %3 : vector<1x128xf32> to vector<1x1x128xf32>
    %19 = vector.broadcast %18 : vector<1x1x128xf32> to vector<4x16x128xf32>
    %20 = arith.addf %17, %19 : vector<4x16x128xf32>
    %cst_12 = arith.constant 0.000000e+00 : f32
    %21 = vector.broadcast %cst_12 : f32 to vector<4x16x128xf32>
    %22 = arith.maximumf %20, %21 : vector<4x16x128xf32>
    %c0_13 = arith.constant 0 : index
    %c0_14 = arith.constant 0 : index
    %c0_15 = arith.constant 0 : index
    %23 = vector.load %arg5[%c0_13, %c0_14, %c0_15] : memref<4x16x128xf32, #tpu.memory_space<vmem>>, vector<4x16x128xf32>
    tpu.vector_store %arg5[%c0_13, %c0_14, %c0_15], %22 {strides = array<i32>} : memref<4x16x128xf32, #tpu.memory_space<vmem>>, vector<4x16x128xf32>,
    return
  }
  func.func @transform_0(%arg0: i32) -> (i32, i32, i32) {
    %c0_i32 = arith.constant 0 : i32
    %c0_i32_0 = arith.constant 0 : i32
    %c0_i32_1 = arith.constant 0 : i32
    return %arg0, %c0_i32, %c0_i32_0 : i32, i32, i32
  }
  func.func @transform_1(%arg0: i32) -> (i32, i32, i32) {
    %c0_i32 = arith.constant 0 : i32
    %c0_i32_0 = arith.constant 0 : i32
    %c0_i32_1 = arith.constant 0 : i32
    return %arg0, %c0_i32, %c0_i32_0 : i32, i32, i32
  }
  func.func @transform_2(%arg0: i32) -> (i32, i32) {
    %c0_i32 = arith.constant 0 : i32
    %c0_i32_0 = arith.constant 0 : i32
    %c0_i32_1 = arith.constant 0 : i32
    return %c0_i32, %c0_i32_0 : i32, i32
  }
  func.func @transform_3(%arg0: i32) -> (i32, i32) {
    %c0_i32 = arith.constant 0 : i32
    %c0_i32_0 = arith.constant 0 : i32
    %c0_i32_1 = arith.constant 0 : i32
    return %c0_i32, %c0_i32_0 : i32, i32
  }
  func.func @transform_4(%arg0: i32) -> (i32, i32, i32) {
    %c0_i32 = arith.constant 0 : i32
    %c0_i32_0 = arith.constant 0 : i32
    %c0_i32_1 = arith.constant 0 : i32
    return %arg0, %c0_i32, %c0_i32_0 : i32, i32, i32
  }
}

</mosaic_0001>

<llo_original>
// kernel: tpu_custom_call.1
$region0: #{tpu_custom_call.1}
  #allocation0 [shape = 'u32[]', space=smem, size = 0x4, offset = 0x4, fixed_abs, tag = 'smem constant byte address 0x4 - core index']
  #allocation1 [shape = 'u32[144,128]{1,0:T(1,128)}', space=vmem, size = 0x12000, scoped, tag = 'internal scratch']
  %s0 = inlined_call_operand.hbm [shape: f32[4,16,16], index: 0, kind: input, shape index: {}]
  %s1 = inlined_call_operand.hbm [shape: f32[4,16,32], index: 1, kind: input, shape index: {}]
  %s2 = inlined_call_operand.hbm [shape: f32[32,128], index: 2, kind: input, shape index: {}]
  %s3 = inlined_call_operand.vmem [shape: f32[1,128], index: 3, kind: input, shape index: {}]
  %s4 = inlined_call_operand.hbm [shape: f32[4,16,128], index: 4, kind: output, shape index: {}]
  %s5 = sld [smem:[#allocation0]]
  $region38: #{tpu_custom_call.1} parent=0
    _
  %s7 = ssub.s32 1, %s5
  %s8 = scalar_select 0, %s7, %s5
  $region1: #{tpu_custom_call.1} parent=0
    #allocation2 [shape = 'u8[32768]{0}', space=vmem, size = 0x8000, scoped, tag = 'input window, operand 0, single buffered']
    #allocation3 [shape = 's32[1]{0}', space=sflag, size = 0x4, scoped, tag = 'scoped memory for tpu_custom_call.1']
    #allocation4 [shape = 's32[1]{0}', space=sflag, size = 0x4, scoped, tag = 'scoped memory for tpu_custom_call.1']
    #allocation5 [shape = 'u8[32768]{0}', space=vmem, size = 0x8000, scoped, tag = 'input window, operand 1, single buffered']
    #allocation6 [shape = 's32[1]{0}', space=sflag, size = 0x4, scoped, tag = 'scoped memory for tpu_custom_call.1']
    #allocation7 [shape = 'u8[16384]{0}', space=vmem, size = 0x4000, scoped, tag = 'input window, operand 2, single buffered']
    #allocation8 [shape = 'u8[32768]{0}', space=vmem, size = 0x8000, scoped, tag = 'output window, operand 0, single buffered']
    %9 = vsyncpa [#allocation3], 0
    %10 = vsyncpa [#allocation6], 0
    %11 = vsyncpa [#allocation4], 0
    // Predicated region
    $region2: #{tpu_custom_call.1} parent=1 // pred_check
      _
    $region3: #{tpu_custom_call.1} parent=1 // pred_check_branch
      %13 = sbr.rel (0) target = $region5
    $region4: #{tpu_custom_call.1} parent=1 // pred_region
      %s15 = ssub.s32 1024, 1024
      %16 = vsyncadd [#allocation3], %s15
      %s17 = sshll.u32 [#allocation2], 4
      %s18 = int_to_ptr.vmem [resolvable:$true] %s17
      %23 = dma.hbm_to_vmem [thread:$0]  %s0, 1024, %s18, [#allocation3], 128, 128, 8
    $region5: #{tpu_custom_call.1} parent=1 // pred_fallthru
      _
    // Predicated region
    $region6: #{tpu_custom_call.1} parent=1 // pred_check
      _
    $region7: #{tpu_custom_call.1} parent=1 // pred_check_branch
      %25 = sbr.rel (0) target = $region9
    $region8: #{tpu_custom_call.1} parent=1 // pred_region
      %s27 = ssub.s32 1024, 1024
      %28 = vsyncadd [#allocation6], %s27
      %s29 = sshll.u32 [#allocation5], 4
      %s30 = int_to_ptr.vmem [resolvable:$true] %s29
      %35 = dma.hbm_to_vmem [thread:$0]  %s1, 1024, %s30, [#allocation6], 128, 128, 8
    $region9: #{tpu_custom_call.1} parent=1 // pred_fallthru
      _
    // Predicated region
    $region10: #{tpu_custom_call.1} parent=1 // pred_check
      _
    $region11: #{tpu_custom_call.1} parent=1 // pred_check_branch
      %37 = sbr.rel (0) target = $region13
    $region12: #{tpu_custom_call.1} parent=1 // pred_region
      %s39 = ssub.s32 512, 512
      %40 = vsyncadd [#allocation6], %s39
      %s41 = sshll.u32 [#allocation7], 4
      %s42 = int_to_ptr.vmem [resolvable:$true] %s41
      %47 = dma.hbm_to_vmem [thread:$0]  %s2, 512, %s42, [#allocation6], 128, 128, 8
    $region13: #{tpu_custom_call.1} parent=1 // pred_fallthru
      _
    // Predicated region
    $region14: #{tpu_custom_call.1} parent=1 // pred_check
      _
    $region15: #{tpu_custom_call.1} parent=1 // pred_check_branch
      %49 = sbr.rel (0) target = $region17
    $region16: #{tpu_custom_call.1} parent=1 // pred_region
      _
    $region17: #{tpu_custom_call.1} parent=1 // pred_fallthru
      _
    // Predicated region
    $region18: #{tpu_custom_call.1} parent=1 // pred_check
      _
    $region19: #{tpu_custom_call.1} parent=1 // pred_check_branch
      %51 = sbr.rel (0) target = $region21
    $region20: #{tpu_custom_call.1} parent=1 // pred_region
      %52 = dma.done [#allocation3], 1024
    $region21: #{tpu_custom_call.1} parent=1 // pred_fallthru
      _
    // Predicated region
    $region22: #{tpu_custom_call.1} parent=1 // pred_check
      _
    $region23: #{tpu_custom_call.1} parent=1 // pred_check_branch
      %54 = sbr.rel (0) target = $region25
    $region24: #{tpu_custom_call.1} parent=1 // pred_region
      %55 = dma.done [#allocation6], 1024
    $region25: #{tpu_custom_call.1} parent=1 // pred_fallthru
      _
    // Predicated region
    $region26: #{tpu_custom_call.1} parent=1 // pred_check
      _
    $region27: #{tpu_custom_call.1} parent=1 // pred_check_branch
      %57 = sbr.rel (0) target = $region29
    $region28: #{tpu_custom_call.1} parent=1 // pred_region
      %58 = dma.done [#allocation6], 512
    $region29: #{tpu_custom_call.1} parent=1 // pred_fallthru
      _
    %v59 = vld [vmem:[#allocation2] sm:$0xff]
    %v60 = vld [vmem:[#allocation2 + $0x8] sm:$0xff]
    %v61 = vld [vmem:[#allocation2 + $0x10] sm:$0xff]
    %v62 = vld [vmem:[#allocation2 + $0x18] sm:$0xff]
    %v63 = vld [vmem:[#allocation2 + $0x20] sm:$0xff]
    %v64 = vld [vmem:[#allocation2 + $0x28] sm:$0xff]
    %v65 = vld [vmem:[#allocation2 + $0x30] sm:$0xff]
    %v66 = vld [vmem:[#allocation2 + $0x38] sm:$0xff]
    %v67 = vld [vmem:[#allocation5] sm:$0xff]
    %v68 = vld [vmem:[#allocation5 + $0x8] sm:$0xff]
    %v69 = vld [vmem:[#allocation5 + $0x10] sm:$0xff]
    %v70 = vld [vmem:[#allocation5 + $0x18] sm:$0xff]
    %v71 = vld [vmem:[#allocation5 + $0x20] sm:$0xff]
    %v72 = vld [vmem:[#allocation5 + $0x28] sm:$0xff]
    %v73 = vld [vmem:[#allocation5 + $0x30] sm:$0xff]
    %v74 = vld [vmem:[#allocation5 + $0x38] sm:$0xff]
    %v75 = vld [vmem:[#allocation7] sm:$0xff]
    %v76 = vld [vmem:[#allocation7 + $0x8] sm:$0xff]
    %v77 = vld [vmem:[#allocation7 + $0x10] sm:$0xff]
    %v78 = vld [vmem:[#allocation7 + $0x18] sm:$0xff]
    %v79 = vld [vmem:[%s3] sm:$0x1]
    %vm80 = vcmask 261120
    %v82 = vsel %vm80, %v67, 0
    %v85 = vsel %vm80, %v68, 0
    %v88 = vsel %vm80, %v69, 0
    %v91 = vsel %vm80, %v70, 0
    %v94 = vsel %vm80, %v71, 0
    %v97 = vsel %vm80, %v72, 0
    %v100 = vsel %vm80, %v73, 0
    %v103 = vsel %vm80, %v74, 0
    %105 = vmatprep.subr.mxu0 0.0
    %106 = vmatpush1.msra.mxu0 0.0
    %107 = vmatprep.subr.mxu0 0.0
    %108 = vmatpush1.msra.mxu0 0.0
    %109 = vmatprep.subr.mxu0 0.0
    %110 = vmatpush1.msra.mxu0 0.0
    %111 = vmatprep.subr.mxu0 0.0
    %112 = vmatpush1.msra.mxu0 0.0
    %113 = vmatprep.subr.mxu0 0.0
    %114 = vmatpush1.msra.mxu0 0.0
    %115 = vmatprep.subr.mxu0 0.0
    %116 = vmatpush1.msra.mxu0 0.0
    %117 = vmatprep.subr.mxu0 0.0
    %118 = vmatpush1.msra.mxu0 0.0
    %119 = vmatprep.subr.mxu0 0.0
    %120 = vmatpush1.msra.mxu0 0.0
    %121 = vmatprep.subr.mxu0 0.0
    %122 = vmatpush1.msra.mxu0 0.0
    %123 = vmatprep.subr.mxu0 0.0
    %124 = vmatpush1.msra.mxu0 0.0
    %125 = vmatprep.subr.mxu0 0.0
    %126 = vmatpush1.msra.mxu0 0.0
    %127 = vmatprep.subr.mxu0 0.0
    %128 = vmatpush1.msra.mxu0 0.0
    %129 = vmatprep.subr.mxu0 0.0
    %130 = vmatpush1.msra.mxu0 %v78
    %131 = vmatprep.subr.mxu0 0.0
    %132 = vmatpush1.msra.mxu0 %v77
    %133 = vmatprep.subr.mxu0 0.0
    %134 = vmatpush1.msra.mxu0 %v76
    %135 = vmatprep.subr.mxu0 0.0
    %136 = vmatpush1.msra.mxu0 %v75
    %137 = vmatprep.subr.mxu0 0.0
    %138 = vmatpush2.msra.mxu0 0.0
    %139 = vmatprep.subr.mxu0 0.0
    %140 = vmatpush2.msra.mxu0 0.0
    %141 = vmatprep.subr.mxu0 0.0
    %142 = vmatpush2.msra.mxu0 0.0
    %143 = vmatprep.subr.mxu0 0.0
    %144 = vmatpush2.msra.mxu0 0.0
    %145 = vmatprep.subr.mxu0 0.0
    %146 = vmatpush2.msra.mxu0 0.0
    %147 = vmatprep.subr.mxu0 0.0
    %148 = vmatpush2.msra.mxu0 0.0
    %149 = vmatprep.subr.mxu0 0.0
    %150 = vmatpush2.msra.mxu0 0.0
    %151 = vmatprep.subr.mxu0 0.0
    %152 = vmatpush2.msra.mxu0 0.0
    %153 = vmatprep.subr.mxu0 0.0
    %154 = vmatpush2.msra.mxu0 0.0
    %155 = vmatprep.subr.mxu0 0.0
    %156 = vmatpush2.msra.mxu0 0.0
    %157 = vmatprep.subr.mxu0 0.0
    %158 = vmatpush2.msra.mxu0 0.0
    %159 = vmatprep.subr.mxu0 0.0
    %160 = vmatpush2.msra.mxu0 0.0
    %161 = vmatprep.subr.mxu0 0.0
    %162 = vmatpush2.msra.mxu0 0.0
    %163 = vmatprep.subr.mxu0 0.0
    %164 = vmatpush2.msra.mxu0 0.0
    %165 = vmatprep.subr.mxu0 0.0
    %166 = vmatpush2.msra.mxu0 0.0
    %167 = vmatprep.subr.mxu0 0.0
    %168 = vmatpush2.msra.mxu0 0.0
    %169 = vmatprep.mubr.f32.mxu0 0.0
    %170 = vmatmul.mubr.f32.gmra.mxu0 %v82
    %v171 = vpop.f32.mrf.mxu0
    %v172 = vadd.f32 0.0, %v171
    %v173 = vpop.f32.mrf.mxu0
    %174 = vmatprep.mubr.f32.mxu0 0.0
    %175 = vmatmul.mubr.f32.gmra.mxu0 %v85
    %v176 = vpop.f32.mrf.mxu0
    %v177 = vadd.f32 0.0, %v176
    %v178 = vpop.f32.mrf.mxu0
    %179 = vmatprep.mubr.f32.mxu0 0.0
    %180 = vmatmul.mubr.f32.gmra.mxu0 %v88
    %v181 = vpop.f32.mrf.mxu0
    %v182 = vadd.f32 0.0, %v181
    %v183 = vpop.f32.mrf.mxu0
    %184 = vmatprep.mubr.f32.mxu0 0.0
    %185 = vmatmul.mubr.f32.gmra.mxu0 %v91
    %v186 = vpop.f32.mrf.mxu0
    %v187 = vadd.f32 0.0, %v186
    %v188 = vpop.f32.mrf.mxu0
    %189 = vmatprep.mubr.f32.mxu0 0.0
    %190 = vmatmul.mubr.f32.gmra.mxu0 %v94
    %v191 = vpop.f32.mrf.mxu0
    %v192 = vadd.f32 0.0, %v191
    %v193 = vpop.f32.mrf.mxu0
    %194 = vmatprep.mubr.f32.mxu0 0.0
    %195 = vmatmul.mubr.f32.gmra.mxu0 %v97
    %v196 = vpop.f32.mrf.mxu0
    %v197 = vadd.f32 0.0, %v196
    %v198 = vpop.f32.mrf.mxu0
    %199 = vmatprep.mubr.f32.mxu0 0.0
    %200 = vmatmul.mubr.f32.gmra.mxu0 %v100
    %v201 = vpop.f32.mrf.mxu0
    %v202 = vadd.f32 0.0, %v201
    %v203 = vpop.f32.mrf.mxu0
    %204 = vmatprep.mubr.f32.mxu0 0.0
    %205 = vmatmul.mubr.f32.gmra.mxu0 %v103
    %v206 = vpop.f32.mrf.mxu0
    %v207 = vadd.f32 0.0, %v206
    %v208 = vpop.f32.mrf.mxu0
    %209 = vdwg.mxu0
    %vm210 = vcmask 130048
    %v211 = vsel %vm210, %v59, 0.0
    %212 = vadd.xlane.f32.xlu0 %v211
    %v213 = vpop.xlane.xlu0 %212
    %v214 = vsel %vm210, %v60, 0.0
    %215 = vadd.xlane.f32.xlu0 %v214
    %v216 = vpop.xlane.xlu0 %215
    %v217 = vsel %vm210, %v61, 0.0
    %218 = vadd.xlane.f32.xlu0 %v217
    %v219 = vpop.xlane.xlu0 %218
    %v220 = vsel %vm210, %v62, 0.0
    %221 = vadd.xlane.f32.xlu0 %v220
    %v222 = vpop.xlane.xlu0 %221
    %v223 = vsel %vm210, %v63, 0.0
    %224 = vadd.xlane.f32.xlu0 %v223
    %v225 = vpop.xlane.xlu0 %224
    %v226 = vsel %vm210, %v64, 0.0
    %227 = vadd.xlane.f32.xlu0 %v226
    %v228 = vpop.xlane.xlu0 %227
    %v229 = vsel %vm210, %v65, 0.0
    %230 = vadd.xlane.f32.xlu0 %v229
    %v231 = vpop.xlane.xlu0 %230
    %v232 = vsel %vm210, %v66, 0.0
    %233 = vadd.xlane.f32.xlu0 %v232
    %v234 = vpop.xlane.xlu0 %233
    %v235 = vadd.f32 %v213, 1.0
    %v236 = vadd.f32 %v216, 1.0
    %v237 = vadd.f32 %v219, 1.0
    %v238 = vadd.f32 %v222, 1.0
    %v239 = vadd.f32 %v225, 1.0
    %v240 = vadd.f32 %v228, 1.0
    %v241 = vadd.f32 %v231, 1.0
    %v242 = vadd.f32 %v234, 1.0
    %v243 = vrsqrt.pop %v235
    %v244 = vrsqrt.pop %v236
    %v245 = vrsqrt.pop %v237
    %v246 = vrsqrt.pop %v238
    %v247 = vrsqrt.pop %v239
    %v248 = vrsqrt.pop %v240
    %v249 = vrsqrt.pop %v241
    %v250 = vrsqrt.pop %v242
    %v251 = vmul.f32 %v243, %v172
    %v252 = vmul.f32 %v244, %v177
    %v253 = vmul.f32 %v245, %v182
    %v254 = vmul.f32 %v246, %v187
    %v255 = vmul.f32 %v247, %v192
    %v256 = vmul.f32 %v248, %v197
    %v257 = vmul.f32 %v249, %v202
    %v258 = vmul.f32 %v250, %v207
    %v260 = vsel %vm210, %v59, 0
    %v263 = vsel %vm210, %v60, 0
    %265 = vmatprep.subr.mxu0 0.0
    %266 = vmatpush1.msra.mxu0 0.0
    %267 = vmatprep.subr.mxu0 0.0
    %268 = vmatpush1.msra.mxu0 0.0
    %269 = vmatprep.subr.mxu0 0.0
    %270 = vmatpush1.msra.mxu0 0.0
    %271 = vmatprep.subr.mxu0 0.0
    %272 = vmatpush1.msra.mxu0 0.0
    %273 = vmatprep.subr.mxu0 0.0
    %274 = vmatpush1.msra.mxu0 0.0
    %275 = vmatprep.subr.mxu0 0.0
    %276 = vmatpush1.msra.mxu0 0.0
    %277 = vmatprep.subr.mxu0 0.0
    %278 = vmatpush1.msra.mxu0 0.0
    %279 = vmatprep.subr.mxu0 0.0
    %280 = vmatpush1.msra.mxu0 0.0
    %281 = vmatprep.subr.mxu0 0.0
    %282 = vmatpush1.msra.mxu0 0.0
    %283 = vmatprep.subr.mxu0 0.0
    %284 = vmatpush1.msra.mxu0 0.0
    %285 = vmatprep.subr.mxu0 0.0
    %286 = vmatpush1.msra.mxu0 0.0
    %287 = vmatprep.subr.mxu0 0.0
    %288 = vmatpush1.msra.mxu0 0.0
    %289 = vmatprep.subr.mxu0 0.0
    %290 = vmatpush1.msra.mxu0 0.0
    %291 = vmatprep.subr.mxu0 0.0
    %292 = vmatpush1.msra.mxu0 0.0
    %293 = vmatprep.subr.mxu0 0.0
    %294 = vmatpush1.msra.mxu0 %v252
    %295 = vmatprep.subr.mxu0 0.0
    %296 = vmatpush1.msra.mxu0 %v251
    %297 = vmatprep.subr.mxu0 0.0
    %298 = vmatpush2.msra.mxu0 0.0
    %299 = vmatprep.subr.mxu0 0.0
    %300 = vmatpush2.msra.mxu0 0.0
    %301 = vmatprep.subr.mxu0 0.0
    %302 = vmatpush2.msra.mxu0 0.0
    %303 = vmatprep.subr.mxu0 0.0
    %304 = vmatpush2.msra.mxu0 0.0
    %305 = vmatprep.subr.mxu0 0.0
    %306 = vmatpush2.msra.mxu0 0.0
    %307 = vmatprep.subr.mxu0 0.0
    %308 = vmatpush2.msra.mxu0 0.0
    %309 = vmatprep.subr.mxu0 0.0
    %310 = vmatpush2.msra.mxu0 0.0
    %311 = vmatprep.subr.mxu0 0.0
    %312 = vmatpush2.msra.mxu0 0.0
    %313 = vmatprep.subr.mxu0 0.0
    %314 = vmatpush2.msra.mxu0 0.0
    %315 = vmatprep.subr.mxu0 0.0
    %316 = vmatpush2.msra.mxu0 0.0
    %317 = vmatprep.subr.mxu0 0.0
    %318 = vmatpush2.msra.mxu0 0.0
    %319 = vmatprep.subr.mxu0 0.0
    %320 = vmatpush2.msra.mxu0 0.0
    %321 = vmatprep.subr.mxu0 0.0
    %322 = vmatpush2.msra.mxu0 0.0
    %323 = vmatprep.subr.mxu0 0.0
    %324 = vmatpush2.msra.mxu0 0.0
    %325 = vmatprep.subr.mxu0 0.0
    %326 = vmatpush2.msra.mxu0 0.0
    %327 = vmatprep.subr.mxu0 0.0
    %328 = vmatpush2.msra.mxu0 0.0
    %329 = vmatprep.mubr.f32.mxu0 0.0
    %330 = vmatmul.mubr.f32.gmra.mxu0 %v260
    %v331 = vpop.f32.mrf.mxu0
    %v332 = vadd.f32 0.0, %v331
    %v333 = vpop.f32.mrf.mxu0
    %334 = vmatprep.mubr.f32.mxu0 0.0
    %335 = vmatmul.mubr.f32.gmra.mxu0 %v263
    %v336 = vpop.f32.mrf.mxu0
    %v337 = vadd.f32 0.0, %v336
    %v338 = vpop.f32.mrf.mxu0
    %339 = vdwg.mxu0
    %v341 = vsel %vm210, %v61, 0
    %v344 = vsel %vm210, %v62, 0
    %346 = vmatprep.subr.mxu0 0.0
    %347 = vmatpush1.msra.mxu0 0.0
    %348 = vmatprep.subr.mxu0 0.0
    %349 = vmatpush1.msra.mxu0 0.0
    %350 = vmatprep.subr.mxu0 0.0
    %351 = vmatpush1.msra.mxu0 0.0
    %352 = vmatprep.subr.mxu0 0.0
    %353 = vmatpush1.msra.mxu0 0.0
    %354 = vmatprep.subr.mxu0 0.0
    %355 = vmatpush1.msra.mxu0 0.0
    %356 = vmatprep.subr.mxu0 0.0
    %357 = vmatpush1.msra.mxu0 0.0
    %358 = vmatprep.subr.mxu0 0.0
    %359 = vmatpush1.msra.mxu0 0.0
    %360 = vmatprep.subr.mxu0 0.0
    %361 = vmatpush1.msra.mxu0 0.0
    %362 = vmatprep.subr.mxu0 0.0
    %363 = vmatpush1.msra.mxu0 0.0
    %364 = vmatprep.subr.mxu0 0.0
    %365 = vmatpush1.msra.mxu0 0.0
    %366 = vmatprep.subr.mxu0 0.0
    %367 = vmatpush1.msra.mxu0 0.0
    %368 = vmatprep.subr.mxu0 0.0
    %369 = vmatpush1.msra.mxu0 0.0
    %370 = vmatprep.subr.mxu0 0.0
    %371 = vmatpush1.msra.mxu0 0.0
    %372 = vmatprep.subr.mxu0 0.0
    %373 = vmatpush1.msra.mxu0 0.0
    %374 = vmatprep.subr.mxu0 0.0
    %375 = vmatpush1.msra.mxu0 %v254
    %376 = vmatprep.subr.mxu0 0.0
    %377 = vmatpush1.msra.mxu0 %v253
    %378 = vmatprep.subr.mxu0 0.0
    %379 = vmatpush2.msra.mxu0 0.0
    %380 = vmatprep.subr.mxu0 0.0
    %381 = vmatpush2.msra.mxu0 0.0
    %382 = vmatprep.subr.mxu0 0.0
    %383 = vmatpush2.msra.mxu0 0.0
    %384 = vmatprep.subr.mxu0 0.0
    %385 = vmatpush2.msra.mxu0 0.0
    %386 = vmatprep.subr.mxu0 0.0
    %387 = vmatpush2.msra.mxu0 0.0
    %388 = vmatprep.subr.mxu0 0.0
    %389 = vmatpush2.msra.mxu0 0.0
    %390 = vmatprep.subr.mxu0 0.0
    %391 = vmatpush2.msra.mxu0 0.0
    %392 = vmatprep.subr.mxu0 0.0
    %393 = vmatpush2.msra.mxu0 0.0
    %394 = vmatprep.subr.mxu0 0.0
    %395 = vmatpush2.msra.mxu0 0.0
    %396 = vmatprep.subr.mxu0 0.0
    %397 = vmatpush2.msra.mxu0 0.0
    %398 = vmatprep.subr.mxu0 0.0
    %399 = vmatpush2.msra.mxu0 0.0
    %400 = vmatprep.subr.mxu0 0.0
    %401 = vmatpush2.msra.mxu0 0.0
    %402 = vmatprep.subr.mxu0 0.0
    %403 = vmatpush2.msra.mxu0 0.0
    %404 = vmatprep.subr.mxu0 0.0
    %405 = vmatpush2.msra.mxu0 0.0
    %406 = vmatprep.subr.mxu0 0.0
    %407 = vmatpush2.msra.mxu0 0.0
    %408 = vmatprep.subr.mxu0 0.0
    %409 = vmatpush2.msra.mxu0 0.0
    %410 = vmatprep.mubr.f32.mxu0 0.0
    %411 = vmatmul.mubr.f32.gmra.mxu0 %v341
    %v412 = vpop.f32.mrf.mxu0
    %v413 = vadd.f32 0.0, %v412
    %v414 = vpop.f32.mrf.mxu0
    %415 = vmatprep.mubr.f32.mxu0 0.0
    %416 = vmatmul.mubr.f32.gmra.mxu0 %v344
    %v417 = vpop.f32.mrf.mxu0
    %v418 = vadd.f32 0.0, %v417
    %v419 = vpop.f32.mrf.mxu0
    %420 = vdwg.mxu0
    %v422 = vsel %vm210, %v63, 0
    %v425 = vsel %vm210, %v64, 0
    %427 = vmatprep.subr.mxu0 0.0
    %428 = vmatpush1.msra.mxu0 0.0
    %429 = vmatprep.subr.mxu0 0.0
    %430 = vmatpush1.msra.mxu0 0.0
    %431 = vmatprep.subr.mxu0 0.0
    %432 = vmatpush1.msra.mxu0 0.0
    %433 = vmatprep.subr.mxu0 0.0
    %434 = vmatpush1.msra.mxu0 0.0
    %435 = vmatprep.subr.mxu0 0.0
    %436 = vmatpush1.msra.mxu0 0.0
    %437 = vmatprep.subr.mxu0 0.0
    %438 = vmatpush1.msra.mxu0 0.0
    %439 = vmatprep.subr.mxu0 0.0
    %440 = vmatpush1.msra.mxu0 0.0
    %441 = vmatprep.subr.mxu0 0.0
    %442 = vmatpush1.msra.mxu0 0.0
    %443 = vmatprep.subr.mxu0 0.0
    %444 = vmatpush1.msra.mxu0 0.0
    %445 = vmatprep.subr.mxu0 0.0
    %446 = vmatpush1.msra.mxu0 0.0
    %447 = vmatprep.subr.mxu0 0.0
    %448 = vmatpush1.msra.mxu0 0.0
    %449 = vmatprep.subr.mxu0 0.0
    %450 = vmatpush1.msra.mxu0 0.0
    %451 = vmatprep.subr.mxu0 0.0
    %452 = vmatpush1.msra.mxu0 0.0
    %453 = vmatprep.subr.mxu0 0.0
    %454 = vmatpush1.msra.mxu0 0.0
    %455 = vmatprep.subr.mxu0 0.0
    %456 = vmatpush1.msra.mxu0 %v256
    %457 = vmatprep.subr.mxu0 0.0
    %458 = vmatpush1.msra.mxu0 %v255
    %459 = vmatprep.subr.mxu0 0.0
    %460 = vmatpush2.msra.mxu0 0.0
    %461 = vmatprep.subr.mxu0 0.0
    %462 = vmatpush2.msra.mxu0 0.0
    %463 = vmatprep.subr.mxu0 0.0
    %464 = vmatpush2.msra.mxu0 0.0
    %465 = vmatprep.subr.mxu0 0.0
    %466 = vmatpush2.msra.mxu0 0.0
    %467 = vmatprep.subr.mxu0 0.0
    %468 = vmatpush2.msra.mxu0 0.0
    %469 = vmatprep.subr.mxu0 0.0
    %470 = vmatpush2.msra.mxu0 0.0
    %471 = vmatprep.subr.mxu0 0.0
    %472 = vmatpush2.msra.mxu0 0.0
    %473 = vmatprep.subr.mxu0 0.0
    %474 = vmatpush2.msra.mxu0 0.0
    %475 = vmatprep.subr.mxu0 0.0
    %476 = vmatpush2.msra.mxu0 0.0
    %477 = vmatprep.subr.mxu0 0.0
    %478 = vmatpush2.msra.mxu0 0.0
    %479 = vmatprep.subr.mxu0 0.0
    %480 = vmatpush2.msra.mxu0 0.0
    %481 = vmatprep.subr.mxu0 0.0
    %482 = vmatpush2.msra.mxu0 0.0
    %483 = vmatprep.subr.mxu0 0.0
    %484 = vmatpush2.msra.mxu0 0.0
    %485 = vmatprep.subr.mxu0 0.0
    %486 = vmatpush2.msra.mxu0 0.0
    %487 = vmatprep.subr.mxu0 0.0
    %488 = vmatpush2.msra.mxu0 0.0
    %489 = vmatprep.subr.mxu0 0.0
    %490 = vmatpush2.msra.mxu0 0.0
    %491 = vmatprep.mubr.f32.mxu0 0.0
    %492 = vmatmul.mubr.f32.gmra.mxu0 %v422
    %v493 = vpop.f32.mrf.mxu0
    %v494 = vadd.f32 0.0, %v493
    %v495 = vpop.f32.mrf.mxu0
    %496 = vmatprep.mubr.f32.mxu0 0.0
    %497 = vmatmul.mubr.f32.gmra.mxu0 %v425
    %v498 = vpop.f32.mrf.mxu0
    %v499 = vadd.f32 0.0, %v498
    %v500 = vpop.f32.mrf.mxu0
    %501 = vdwg.mxu0
    %v503 = vsel %vm210, %v65, 0
    %v506 = vsel %vm210, %v66, 0
    %508 = vmatprep.subr.mxu0 0.0
    %509 = vmatpush1.msra.mxu0 0.0
    %510 = vmatprep.subr.mxu0 0.0
    %511 = vmatpush1.msra.mxu0 0.0
    %512 = vmatprep.subr.mxu0 0.0
    %513 = vmatpush1.msra.mxu0 0.0
    %514 = vmatprep.subr.mxu0 0.0
    %515 = vmatpush1.msra.mxu0 0.0
    %516 = vmatprep.subr.mxu0 0.0
    %517 = vmatpush1.msra.mxu0 0.0
    %518 = vmatprep.subr.mxu0 0.0
    %519 = vmatpush1.msra.mxu0 0.0
    %520 = vmatprep.subr.mxu0 0.0
    %521 = vmatpush1.msra.mxu0 0.0
    %522 = vmatprep.subr.mxu0 0.0
    %523 = vmatpush1.msra.mxu0 0.0
    %524 = vmatprep.subr.mxu0 0.0
    %525 = vmatpush1.msra.mxu0 0.0
    %526 = vmatprep.subr.mxu0 0.0
    %527 = vmatpush1.msra.mxu0 0.0
    %528 = vmatprep.subr.mxu0 0.0
    %529 = vmatpush1.msra.mxu0 0.0
    %530 = vmatprep.subr.mxu0 0.0
    %531 = vmatpush1.msra.mxu0 0.0
    %532 = vmatprep.subr.mxu0 0.0
    %533 = vmatpush1.msra.mxu0 0.0
    %534 = vmatprep.subr.mxu0 0.0
    %535 = vmatpush1.msra.mxu0 0.0
    %536 = vmatprep.subr.mxu0 0.0
    %537 = vmatpush1.msra.mxu0 %v258
    %538 = vmatprep.subr.mxu0 0.0
    %539 = vmatpush1.msra.mxu0 %v257
    %540 = vmatprep.subr.mxu0 0.0
    %541 = vmatpush2.msra.mxu0 0.0
    %542 = vmatprep.subr.mxu0 0.0
    %543 = vmatpush2.msra.mxu0 0.0
    %544 = vmatprep.subr.mxu0 0.0
    %545 = vmatpush2.msra.mxu0 0.0
    %546 = vmatprep.subr.mxu0 0.0
    %547 = vmatpush2.msra.mxu0 0.0
    %548 = vmatprep.subr.mxu0 0.0
    %549 = vmatpush2.msra.mxu0 0.0
    %550 = vmatprep.subr.mxu0 0.0
    %551 = vmatpush2.msra.mxu0 0.0
    %552 = vmatprep.subr.mxu0 0.0
    %553 = vmatpush2.msra.mxu0 0.0
    %554 = vmatprep.subr.mxu0 0.0
    %555 = vmatpush2.msra.mxu0 0.0
    %556 = vmatprep.subr.mxu0 0.0
    %557 = vmatpush2.msra.mxu0 0.0
    %558 = vmatprep.subr.mxu0 0.0
    %559 = vmatpush2.msra.mxu0 0.0
    %560 = vmatprep.subr.mxu0 0.0
    %561 = vmatpush2.msra.mxu0 0.0
    %562 = vmatprep.subr.mxu0 0.0
    %563 = vmatpush2.msra.mxu0 0.0
    %564 = vmatprep.subr.mxu0 0.0
    %565 = vmatpush2.msra.mxu0 0.0
    %566 = vmatprep.subr.mxu0 0.0
    %567 = vmatpush2.msra.mxu0 0.0
    %568 = vmatprep.subr.mxu0 0.0
    %569 = vmatpush2.msra.mxu0 0.0
    %570 = vmatprep.subr.mxu0 0.0
    %571 = vmatpush2.msra.mxu0 0.0
    %572 = vmatprep.mubr.f32.mxu0 0.0
    %573 = vmatmul.mubr.f32.gmra.mxu0 %v503
    %v574 = vpop.f32.mrf.mxu0
    %v575 = vadd.f32 0.0, %v574
    %v576 = vpop.f32.mrf.mxu0
    %577 = vmatprep.mubr.f32.mxu0 0.0
    %578 = vmatmul.mubr.f32.gmra.mxu0 %v506
    %v579 = vpop.f32.mrf.mxu0
    %v580 = vadd.f32 0.0, %v579
    %v581 = vpop.f32.mrf.mxu0
    %582 = vdwg.mxu0
    %v583 = vadd.f32 %v251, %v332
    %v584 = vadd.f32 %v252, %v337
    %v585 = vadd.f32 %v253, %v413
    %v586 = vadd.f32 %v254, %v418
    %v587 = vadd.f32 %v255, %v494
    %v588 = vadd.f32 %v256, %v499
    %v589 = vadd.f32 %v257, %v575
    %v590 = vadd.f32 %v258, %v580
    %v591 = vmul.f32 %v243, %v583
    %v592 = vmul.f32 %v244, %v584
    %v593 = vmul.f32 %v245, %v585
    %v594 = vmul.f32 %v246, %v586
    %v595 = vmul.f32 %v247, %v587
    %v596 = vmul.f32 %v248, %v588
    %v597 = vmul.f32 %v249, %v589
    %v598 = vmul.f32 %v250, %v590
    %v600 = vlaneseq
    %v601 = vshrl.u32 %v600, 7
    %v602 = vsub.s32 0, %v601
    %v603 = vrot.slane %v79, %v602
    %v605 = vadd.f32 %v591, %v603
    %v606 = vadd.f32 %v592, %v603
    %v607 = vadd.f32 %v593, %v603
    %v608 = vadd.f32 %v594, %v603
    %v609 = vadd.f32 %v595, %v603
    %v610 = vadd.f32 %v596, %v603
    %v611 = vadd.f32 %v597, %v603
    %v612 = vadd.f32 %v598, %v603
    %v613 = vmax.f32 %v605, 0.0
    %v614 = vmax.f32 %v606, 0.0
    %v615 = vmax.f32 %v607, 0.0
    %v616 = vmax.f32 %v608, 0.0
    %v617 = vmax.f32 %v609, 0.0
    %v618 = vmax.f32 %v610, 0.0
    %v619 = vmax.f32 %v611, 0.0
    %v620 = vmax.f32 %v612, 0.0
    %621 = vst [vmem:[#allocation8] sm:$0xff] %v613
    %622 = vst [vmem:[#allocation8 + $0x8] sm:$0xff] %v614
    %623 = vst [vmem:[#allocation8 + $0x10] sm:$0xff] %v615
    %624 = vst [vmem:[#allocation8 + $0x18] sm:$0xff] %v616
    %625 = vst [vmem:[#allocation8 + $0x20] sm:$0xff] %v617
    %626 = vst [vmem:[#allocation8 + $0x28] sm:$0xff] %v618
    %627 = vst [vmem:[#allocation8 + $0x30] sm:$0xff] %v619
    %628 = vst [vmem:[#allocation8 + $0x38] sm:$0xff] %v620
    // Predicated region
    $region30: #{tpu_custom_call.1} parent=1 // pred_check
      _
    $region31: #{tpu_custom_call.1} parent=1 // pred_check_branch
      %630 = sbr.rel (0) target = $region33
    $region32: #{tpu_custom_call.1} parent=1 // pred_region
      %s632 = ssub.s32 1024, 1024
      %633 = vsyncadd [#allocation4], %s632
      %s634 = sshll.u32 [#allocation8], 4
      %s635 = int_to_ptr.vmem [resolvable:$true] %s634
      %640 = dma.vmem_to_hbm [thread:$0]  %s635, 1024, %s4, [#allocation4], 128, 128, 8
    $region33: #{tpu_custom_call.1} parent=1 // pred_fallthru
      _
    // Predicated region
    $region34: #{tpu_custom_call.1} parent=1 // pred_check
      _
    $region35: #{tpu_custom_call.1} parent=1 // pred_check_branch
      %642 = sbr.rel (0) target = $region37
    $region36: #{tpu_custom_call.1} parent=1 // pred_region
      %643 = dma.done [#allocation4], 1024
    $region37: #{tpu_custom_call.1} parent=1 // pred_fallthru
      _
    %644 = vsyncpa [#allocation3], 1
    %645 = vsyncpa [#allocation6], 1
    %646 = vsyncpa [#allocation4], 1

</llo_original>
